<compile_context>
chip_gen: v5e
topology: v5e:2x2
jax: 0.10.0
libtpu: 0.0.40
codegen_flags: <defaults>
</compile_context>

<pallas_src>
import functools

import jax
import jax.numpy as jnp
import numpy as np
from jax.experimental import pallas as pl
from jax.experimental.pallas import tpu as pltpu

LANE = 128


def _round_up(x, m):
    return ((x + m - 1) // m) * m


def _pick_bt(B, target):
    """Largest divisor of B that is <= target, preferring >= 2 grid steps."""
    divs = [d for d in range(1, B + 1) if B % d == 0]
    cands = [d for d in divs if d <= target and B // d >= 2]
    if not cands:
        cands = [d for d in divs if d <= target] or [1]
    return max(cands)


# ---------------- parameter / filter setup (plain JAX glue) ----------------

def get_hankel(sl, use_hankel_L=False, dtype=jnp.float32):
    entries = jnp.arange(1, sl + 1, dtype=dtype)
    i_plus_j = entries[:, None] + entries[None, :]
    if use_hankel_L:
        sgn = (-1.0) ** (i_plus_j - 2.0) + 1.0
        denom = (i_plus_j + 3.0) * (i_plus_j - 1.0) * (i_plus_j + 1.0)
        return sgn * (8.0 / denom)
    return 2.0 / (i_plus_j ** 3 - i_plus_j)


def get_top_eigh(sl, k, use_hankel_L=False):
    Z = get_hankel(sl, use_hankel_L)
    sigma, phi = jnp.linalg.eigh(Z)          # ascending eigenvalues
    return sigma[-k:], phi[:, -k:]           # (k,), (sl, k)


def build_kernel_operands(sigma, phi, m_u, m_phi_plus, m_phi_minus, k_y):
    """Pack ALL filters and ALL projection weights into two bf16 operands.

    Returns:
      f_wide : (L, n_filt*L) bf16 with f_wide[t, c*L + s] = F[c][t, s], where
               filters 0..K-1   = spectral plus  (sigma**0.25, k_y folded in),
               filters K..2K-1  = spectral minus,
               filters 2K..2K+k_u-1 = one-hot AR shift-by-i Toeplitz.
      w_wide : (d_in, n_filt*d_out_p) bf16 with w_wide[d, c*d_out_p + o] =
               W[c][d, o]; d_out zero-padded to 128, d_in left natural.
    """
    L, K = phi.shape
    k_u, d_out, d_in = m_u.shape
    d_out_p = _round_up(d_out, LANE)
    n_filt = 2 * K + k_u

    t = jnp.arange(L)[:, None]
    s = jnp.arange(L)[None, :]

    # Spectral plus/minus causal Toeplitz filters (f32 until final cast).
    lag = t - s - k_y                                   # (L, L)
    valid = lag >= 0
    lag_c = jnp.clip(lag, 0, L - 1)
    phi_scaled = phi * (sigma ** 0.25)[None, :]         # (L, K)
    base = phi_scaled[lag_c]                            # (L, L, K)
    f_plus = jnp.where(valid[..., None], base, 0.0)
    alt = jnp.where(lag_c % 2 == 0, 1.0, -1.0)[..., None]
    f_minus = jnp.where(valid[..., None], base * alt, 0.0)

    # AR-on-input one-hot shift filters: F[i][t, s] = 1 iff t - s == i.
    shift = jnp.arange(k_u)[None, None, :]
    f_ar = (t[..., None] - s[..., None] == shift).astype(jnp.float32)  # (L,L,k_u)

    f_all = jnp.concatenate(
        [jnp.transpose(f_plus, (2, 0, 1)),
         jnp.transpose(f_minus, (2, 0, 1)),
         jnp.transpose(f_ar, (2, 0, 1))], axis=0)       # (n_filt, L, L)
    f_wide = jnp.transpose(f_all, (1, 0, 2)).reshape(L, n_filt * L)

    def pad_w(m):  # (n, d_out, d_in) -> (n, d_in, d_out_p); only d_out padded
        w = jnp.transpose(m, (0, 2, 1))
        return jnp.pad(w, ((0, 0), (0, 0), (0, d_out_p - d_out)))

    w_all = jnp.concatenate(
        [pad_w(m_phi_plus), pad_w(m_phi_minus), pad_w(m_u)], axis=0)  # (n_filt, d_in, d_out_p)
    w_wide = jnp.transpose(w_all, (1, 0, 2)).reshape(d_in, n_filt * d_out_p)

    return f_wide.astype(jnp.bfloat16), w_wide.astype(jnp.bfloat16)


# --------------------------- Pallas kernel ---------------------------------

def _stu_kernel(u_ref, w_ref, f_ref, o_ref, *, n_filt, bt, L, d_out_p):
    # u block: (1, bt*L, d_in) f32 -> (bt*L, d_in) bf16.  Cast in-kernel so
    # the wrapper has no extra pad/cast HBM pass.
    u = u_ref[0].astype(jnp.bfloat16)

    # (1) ONE wide projection matmul over the whole filter bank, f32 accum.
    v_wide = jnp.dot(u, w_ref[...], preferred_element_type=jnp.float32)
    v_wide = v_wide.astype(jnp.bfloat16)            # single cast, feeds MXU #2

    # Relayout (bt*L, n_filt*128) -> (n_filt*L, bt*128):
    #   v_stack[c*L + s, b*128 + o] = v_wide[b*L + s, c*128 + o]
    # All slice boundaries are (sublane, lane)-tile aligned -> pure copies.
    if bt == 1:
        cols = [v_wide[:, c * d_out_p:(c + 1) * d_out_p] for c in range(n_filt)]
    else:
        cols = [
            jnp.concatenate(
                [v_wide[b * L:(b + 1) * L, c * d_out_p:(c + 1) * d_out_p]
                 for b in range(bt)], axis=1)
            for c in range(n_filt)
        ]
    v_stack = jnp.concatenate(cols, axis=0)          # (n_filt*L, bt*128) bf16

    # (2) ONE wide filter-bank contraction: spectral Toeplitz (sigma**0.25 and
    # k_y folded in) + AR one-hot shifts, all in a single MXU matmul.
    y = jnp.dot(f_ref[...], v_stack, preferred_element_type=jnp.float32)

    # m_y term of the module acts on zeros -> contributes nothing.
    o_ref[0] = y.astype(o_ref.dtype)


def stu_forward(inputs, f_wide, w_wide, d_out, *, batch_block=8):
    B, L, d_in = inputs.shape
    n_filt = f_wide.shape[1] // L
    d_out_p = w_wide.shape[1] // n_filt

    bt = _pick_bt(B, batch_block)    # >= 2 grid steps when possible (v7x 2 TCs)
    nb = B // bt

    # Contiguous, copy-free layout change: batch block rides the M dim.
    u_r = inputs.reshape(nb, bt * L, d_in)

    kernel = functools.partial(_stu_kernel, n_filt=n_filt, bt=bt, L=L,
                               d_out_p=d_out_p)
    out = pl.pallas_call(
        kernel,
        out_shape=jax.ShapeDtypeStruct((nb, L, bt * d_out_p), inputs.dtype),
        grid_spec=pltpu.PrefetchScalarGridSpec(
            num_scalar_prefetch=0,
            grid=(nb,),  # one step per batch block; filter/weight blocks have
                         # constant index maps -> fetched once, not nb times.
            in_specs=[
                pl.BlockSpec((1, bt * L, d_in), lambda g: (g, 0, 0)),
                pl.BlockSpec((d_in, n_filt * d_out_p), lambda g: (0, 0)),
                pl.BlockSpec((L, n_filt * L), lambda g: (0, 0)),
            ],
            out_specs=pl.BlockSpec((1, L, bt * d_out_p), lambda g: (g, 0, 0)),
        ),
        compiler_params=pltpu.CompilerParams(
            dimension_semantics=("parallel",),   # batch blocks feed both TCs
            vmem_limit_bytes=64 * 1024 * 1024,
        ),
    )(u_r, w_wide, f_wide)

    # Wrapper-side layout plumbing: un-interleave batch lanes, drop d_out pad.
    out = out.reshape(nb, L, bt, d_out_p).transpose(0, 2, 1, 3)
    out = out.reshape(B, L, d_out_p)
    return out[:, :, :d_out]


# ----------------------- independent JAX reference -------------------------

def stu_reference(u, sigma, phi, m_u, m_phi_plus, m_phi_minus, k_y):
    B, L, d_in = u.shape
    K = phi.shape[1]
    d_out = m_u.shape[1]

    # AR on input: ar[b,t,o] = sum_i sum_d m_u[i,o,d] * u[b,t-i,d]
    ar = jnp.zeros((B, L, d_out), jnp.float32)
    for i in range(m_u.shape[0]):
        u_s = jnp.pad(u, ((0, 0), (i, 0), (0, 0)))[:, :L]
        ar = ar + jnp.einsum('bld,od->blo', u_s, m_u[i])
    # m_y acts on torch.zeros_like(inputs) with zero init -> no-op.

    # Spectral: causal convolutions with phi and (-1)^s * phi, shifted by k_y.
    sgn = jnp.where(jnp.arange(L) % 2 == 0, 1.0, -1.0)
    Up = jnp.zeros((B, L, K, d_in), jnp.float32)
    Um = jnp.zeros((B, L, K, d_in), jnp.float32)
    for sft in range(L):
        u_s = jnp.pad(u, ((0, 0), (sft, 0), (0, 0)))[:, :L]
        Up = Up + phi[sft][None, None, :, None] * u_s[:, :, None, :]
        Um = Um + (sgn[sft] * phi[sft])[None, None, :, None] * u_s[:, :, None, :]
    Up = jnp.pad(Up, ((0, 0), (k_y, 0), (0, 0), (0, 0)))[:, :L]
    Um = jnp.pad(Um, ((0, 0), (k_y, 0), (0, 0), (0, 0)))[:, :L]
    scale = sigma ** 0.25
    sp = jnp.einsum('blkd,k,kod->blo', Up, scale, m_phi_plus)
    sm = jnp.einsum('blkd,k,kod->blo', Um, scale, m_phi_minus)
    return ar + sp + sm


# --------------------------------- main -------------------------------------

if __name__ == "__main__":
    # Small config consistent with the module's __init__.
    d_in, d_out = 32, 32
    sl, num_eigh = 16, 8
    k_u, k_y = 3, 2
    use_hankel_L = False
    B = 2

    key = jax.random.PRNGKey(0)
    k1, k2, k3, k4 = jax.random.split(key, 4)
    inputs = jax.random.normal(k1, (B, sl, d_in), jnp.float32)
    # Deterministic synthetic parameters (module uses torch.empty + external init).
    m_u = 0.02 * jax.random.normal(k2, (k_u, d_out, d_in), jnp.float32)
    m_phi_plus = 0.02 * jax.random.normal(k3, (num_eigh, d_out, d_in), jnp.float32)
    m_phi_minus = 0.02 * jax.random.normal(k4, (num_eigh, d_out, d_in), jnp.float32)

    sigma, phi = get_top_eigh(sl, num_eigh, use_hankel_L)
    f_wide, w_wide = build_kernel_operands(
        sigma, phi, m_u, m_phi_plus, m_phi_minus, k_y)

    out = stu_forward(inputs, f_wide, w_wide, d_out)
    out = jax.block_until_ready(out)

    ref = stu_reference(inputs, sigma, phi, m_u, m_phi_plus, m_phi_minus, k_y)
    assert out.shape == (B, sl, d_out)
    # bf16 MXU operands with f32 accumulation -> loosened tolerance vs pure-f32.
    np.testing.assert_allclose(np.asarray(out), np.asarray(ref),
                               rtol=2e-2, atol=2e-2)
    print("KERNEL_OK")
</pallas_src>

<mosaic_0001>
module attributes {stable_mosaic.version = 11 : i64} {
  func.func @_stu_kernel(%arg0: i32, %arg1: memref<1x16x32xf32, #tpu.memory_space<vmem>>, %arg2: memref<32x2432xbf16, #tpu.memory_space<vmem>>, %arg3: memref<16x304xbf16, #tpu.memory_space<vmem>>, %arg4: memref<1x16x128xf32, #tpu.memory_space<vmem>>) attributes {dimension_semantics = [#tpu.dimension_semantics<parallel>], iteration_bounds = array<i64: 2>, scalar_prefetch = 0 : i64, scratch_operands = 0 : i64, tpu.core_type = #tpu.core_type<tc>, window_params = [{transform_indices = @transform_0, window_bounds = array<i64: 1, 16, 32>}, {pipeline_mode = #tpu.pipeline_mode<synchronous>, transform_indices = @transform_1, window_bounds = array<i64: 32, 2432>}, {pipeline_mode = #tpu.pipeline_mode<synchronous>, transform_indices = @transform_2, window_bounds = array<i64: 16, 304>}, {transform_indices = @transform_3, window_bounds = array<i64: 1, 16, 128>}]} {
    %c0 = arith.constant 0 : index
    %c0_0 = arith.constant 0 : index
    %c0_1 = arith.constant 0 : index
    %0 = vector.load %arg1[%c0, %c0_0, %c0_1] : memref<1x16x32xf32, #tpu.memory_space<vmem>>, vector<1x16x32xf32>
    %1 = vector.shape_cast %0 : vector<1x16x32xf32> to vector<16x32xf32>
    %2 = arith.truncf %1 : vector<16x32xf32> to vector<16x32xbf16>
    %c0_2 = arith.constant 0 : index
    %c0_3 = arith.constant 0 : index
    %3 = vector.load %arg2[%c0_2, %c0_3] : memref<32x2432xbf16, #tpu.memory_space<vmem>>, vector<32x2432xbf16>
    %cst = arith.constant dense<0.000000e+00> : vector<16x2432xf32>
    %4 = tpu.matmul %2, %3, %cst {dimension_numbers = #tpu.dot_dimension_numbers<[1], [0], [0], [1], [0, 0, 1, 1], [], []>} : vector<16x32xbf16>, vector<32x2432xbf16>, vector<16x2432xf32> -> vector<16x2432xf32>
    %5 = arith.truncf %4 : vector<16x2432xf32> to vector<16x2432xbf16>
    %6 = vector.extract_strided_slice %5 {offsets = [0, 0], sizes = [16, 128], strides = [1, 1]} : vector<16x2432xbf16> to vector<16x128xbf16>
    %7 = vector.extract_strided_slice %5 {offsets = [0, 128], sizes = [16, 128], strides = [1, 1]} : vector<16x2432xbf16> to vector<16x128xbf16>
    %8 = vector.extract_strided_slice %5 {offsets = [0, 256], sizes = [16, 128], strides = [1, 1]} : vector<16x2432xbf16> to vector<16x128xbf16>
    %9 = vector.extract_strided_slice %5 {offsets = [0, 384], sizes = [16, 128], strides = [1, 1]} : vector<16x2432xbf16> to vector<16x128xbf16>
    %10 = vector.extract_strided_slice %5 {offsets = [0, 512], sizes = [16, 128], strides = [1, 1]} : vector<16x2432xbf16> to vector<16x128xbf16>
    %11 = vector.extract_strided_slice %5 {offsets = [0, 640], sizes = [16, 128], strides = [1, 1]} : vector<16x2432xbf16> to vector<16x128xbf16>
    %12 = vector.extract_strided_slice %5 {offsets = [0, 768], sizes = [16, 128], strides = [1, 1]} : vector<16x2432xbf16> to vector<16x128xbf16>
    %13 = vector.extract_strided_slice %5 {offsets = [0, 896], sizes = [16, 128], strides = [1, 1]} : vector<16x2432xbf16> to vector<16x128xbf16>
    %14 = vector.extract_strided_slice %5 {offsets = [0, 1024], sizes = [16, 128], strides = [1, 1]} : vector<16x2432xbf16> to vector<16x128xbf16>
    %15 = vector.extract_strided_slice %5 {offsets = [0, 1152], sizes = [16, 128], strides = [1, 1]} : vector<16x2432xbf16> to vector<16x128xbf16>
    %16 = vector.extract_strided_slice %5 {offsets = [0, 1280], sizes = [16, 128], strides = [1, 1]} : vector<16x2432xbf16> to vector<16x128xbf16>
    %17 = vector.extract_strided_slice %5 {offsets = [0, 1408], sizes = [16, 128], strides = [1, 1]} : vector<16x2432xbf16> to vector<16x128xbf16>
    %18 = vector.extract_strided_slice %5 {offsets = [0, 1536], sizes = [16, 128], strides = [1, 1]} : vector<16x2432xbf16> to vector<16x128xbf16>
    %19 = vector.extract_strided_slice %5 {offsets = [0, 1664], sizes = [16, 128], strides = [1, 1]} : vector<16x2432xbf16> to vector<16x128xbf16>
    %20 = vector.extract_strided_slice %5 {offsets = [0, 1792], sizes = [16, 128], strides = [1, 1]} : vector<16x2432xbf16> to vector<16x128xbf16>
    %21 = vector.extract_strided_slice %5 {offsets = [0, 1920], sizes = [16, 128], strides = [1, 1]} : vector<16x2432xbf16> to vector<16x128xbf16>
    %22 = vector.extract_strided_slice %5 {offsets = [0, 2048], sizes = [16, 128], strides = [1, 1]} : vector<16x2432xbf16> to vector<16x128xbf16>
    %23 = vector.extract_strided_slice %5 {offsets = [0, 2176], sizes = [16, 128], strides = [1, 1]} : vector<16x2432xbf16> to vector<16x128xbf16>
    %24 = vector.extract_strided_slice %5 {offsets = [0, 2304], sizes = [16, 128], strides = [1, 1]} : vector<16x2432xbf16> to vector<16x128xbf16>
    %25 = tpu.concatenate %6, %7, %8, %9, %10, %11, %12, %13, %14, %15, %16, %17, %18, %19, %20, %21 in 0 : vector<16x128xbf16>, vector<16x128xbf16>, vector<16x128xbf16>, vector<16x128xbf16>, vector<16x128xbf16>, vector<16x128xbf16>, vector<16x128xbf16>, vector<16x128xbf16>, vector<16x128xbf16>, vector<16x128xbf16>, vector<16x128xbf16>, vector<16x128xbf16>, vector<16x128xbf16>, vector<16x128xbf16>, vector<16x128xbf16>, vector<16x128xbf16> -> vector<256x128xbf16>
    %26 = tpu.concatenate %22, %23, %24 in 0 : vector<16x128xbf16>, vector<16x128xbf16>, vector<16x128xbf16> -> vector<48x128xbf16>
    %27 = tpu.concatenate %25, %26 in 0 : vector<256x128xbf16>, vector<48x128xbf16> -> vector<304x128xbf16>
    %c0_4 = arith.constant 0 : index
    %c0_5 = arith.constant 0 : index
    %28 = vector.load %arg3[%c0_4, %c0_5] : memref<16x304xbf16, #tpu.memory_space<vmem>>, vector<16x304xbf16>
    %cst_6 = arith.constant dense<0.000000e+00> : vector<16x128xf32>
    %29 = tpu.matmul %28, %27, %cst_6 {dimension_numbers = #tpu.dot_dimension_numbers<[1], [0], [0], [1], [0, 0, 1, 1], [], []>} : vector<16x304xbf16>, vector<304x128xbf16>, vector<16x128xf32> -> vector<16x128xf32>
    %c0_7 = arith.constant 0 : index
    %c0_8 = arith.constant 0 : index
    %c0_9 = arith.constant 0 : index
    %30 = vector.load %arg4[%c0_7, %c0_8, %c0_9] : memref<1x16x128xf32, #tpu.memory_space<vmem>>, vector<1x16x128xf32>
    %31 = vector.shape_cast %30 : vector<1x16x128xf32> to vector<16x128xf32>
    %32 = vector.shape_cast %29 : vector<16x128xf32> to vector<1x16x128xf32>
    tpu.vector_store %arg4[%c0_7, %c0_8, %c0_9], %32 {strides = array<i32>} : memref<1x16x128xf32, #tpu.memory_space<vmem>>, vector<1x16x128xf32>,
    return
  }
  func.func @transform_0(%arg0: i32) -> (i32, i32, i32) {
    %c0_i32 = arith.constant 0 : i32
    %c0_i32_0 = arith.constant 0 : i32
    %c0_i32_1 = arith.constant 0 : i32
    return %arg0, %c0_i32, %c0_i32_0 : i32, i32, i32
  }
  func.func @transform_1(%arg0: i32) -> (i32, i32) {
    %c0_i32 = arith.constant 0 : i32
    %c0_i32_0 = arith.constant 0 : i32
    %c0_i32_1 = arith.constant 0 : i32
    return %c0_i32, %c0_i32_0 : i32, i32
  }
  func.func @transform_2(%arg0: i32) -> (i32, i32) {
    %c0_i32 = arith.constant 0 : i32
    %c0_i32_0 = arith.constant 0 : i32
    %c0_i32_1 = arith.constant 0 : i32
    return %c0_i32, %c0_i32_0 : i32, i32
  }
  func.func @transform_3(%arg0: i32) -> (i32, i32, i32) {
    %c0_i32 = arith.constant 0 : i32
    %c0_i32_0 = arith.constant 0 : i32
    %c0_i32_1 = arith.constant 0 : i32
    return %arg0, %c0_i32, %c0_i32_0 : i32, i32, i32
  }
}

</mosaic_0001>

<llo_original>
// kernel: tpu_custom_call.1
$region0: #{tpu_custom_call.1}
  #allocation0 [shape = 'u32[]', space=smem, size = 0x4, offset = 0x4, fixed_abs, tag = 'smem constant byte address 0x4 - core index']
  #allocation1 [shape = 'u32[72,128]{1,0:T(1,128)}', space=vmem, size = 0x9000, scoped, tag = 'internal scratch']
  %s0 = inlined_call_operand.hbm [shape: f32[2,16,32], index: 0, kind: input, shape index: {}]
  %s1 = inlined_call_operand.hbm [shape: bf16[32,2432], index: 1, kind: input, shape index: {}]
  %s2 = inlined_call_operand.hbm [shape: bf16[16,304], index: 2, kind: input, shape index: {}]
  %s3 = inlined_call_operand.hbm [shape: f32[2,16,128], index: 3, kind: output, shape index: {}]
  %s4 = sld [smem:[#allocation0]]
  $region57: #{tpu_custom_call.1} parent=0
    _
  %s6 = ssub.s32 1, %s4
  %s7 = scalar_select 0, %s6, %s4
  $region1: #{tpu_custom_call.1} parent=0
    #allocation2 [shape = 'u8[16384]{0}', space=vmem, size = 0x4000, scoped, tag = 'input window, operand 0']
    #allocation3 [shape = 's32[2]{0}', space=sflag, size = 0x8, scoped, tag = 'scoped memory for tpu_custom_call.1']
    #allocation4 [shape = 's32[2]{0}', space=sflag, size = 0x8, scoped, tag = 'scoped memory for tpu_custom_call.1']
    #allocation5 [shape = 'u8[155648]{0}', space=vmem, size = 0x26000, scoped, tag = 'input window, operand 1, single buffered']
    #allocation6 [shape = 's32[1]{0}', space=sflag, size = 0x4, scoped, tag = 'scoped memory for tpu_custom_call.1']
    #allocation7 [shape = 'u8[12288]{0}', space=vmem, size = 0x3000, scoped, tag = 'input window, operand 2, single buffered']
    #allocation8 [shape = 'u8[16384]{0}', space=vmem, size = 0x4000, scoped, tag = 'output window, operand 0']
    %8 = vsyncpa [#allocation3], 0
    %s9 = scalar_lea.sflag [#allocation3], 1
    %10 = vsyncpa %s9, 0
    %11 = vsyncpa [#allocation6], 0
    %12 = vsyncpa [#allocation4], 0
    %s13 = scalar_lea.sflag [#allocation4], 1
    %14 = vsyncpa %s13, 0
    loop: start=0, step=1, limit=4
    $region2: #{tpu_custom_call.1} parent=1 // loop_pre_header
      _
    $region3: #{tpu_custom_call.1} parent=1 // loop_header
      %s16 = sphi 0, %s20
      %p17 = scmp.ge.s32.totalorder %s16, 4
      %s26 = sphi 0, %s28
      %s29 = sphi 0, %s26
      %s30 = sphi 0, %s29
      %s46 = sphi 0, %s30
      %s50 = sphi 0, %s50
      %s52 = sphi 0, %s50
      %s53 = sphi 0, %s52
      %s67 = sphi 0, %s53
      %s71 = sphi 0, %s71
      %s73 = sphi 0, %s71
      %s74 = sphi 0, %s73
      %s88 = sphi 0, %s74
      %s94 = sphi 0, %s96
      %s97 = sphi 0, %s94
      %s98 = sphi 0, %s97
      %s114 = sphi 0, %s98
    $region4: #{tpu_custom_call.1} parent=1 // loop_header_branch
      %19 = sbr.rel (%p17) target = $region8
    $region5: #{tpu_custom_call.1} parent=1 // loop_body
      %s21 = ssub.s32 %s16, 1
      %s22 = ssub.s32 %s16, 2
      %s23 = sadd.s32 %s16, 1
      %s24 = ssub.s32 %s16, %s23
      %p25 = scmp.eq.s32.totalorder %s24, 0
      %s27 = sadd.s32 %s26, 1
      %s28 = scalar_select %p25, %s26, %s27
      %p31 = pneg %p25
      %p32 = scmp.eq.s32.totalorder %s16, 1
      %p33 = por %p31, %p32
      %p34 = scmp.ne.s32.totalorder %s26, %s29
      %p35 = scmp.eq.s32.totalorder %s16, 0
      %p36 = por %p34, %p35
      %p37 = scmp.ne.s32.totalorder %s26, %s29
      %p38 = scmp.eq.s32.totalorder %s21, 1
      %p39 = por %p37, %p38
      %p40 = scmp.ne.s32.totalorder %s29, %s30
      %p41 = scmp.eq.s32.totalorder %s21, 0
      %p42 = por %p40, %p41
      %p43 = scmp.ne.s32.totalorder %s29, %s30
      %p44 = scmp.eq.s32.totalorder %s22, 1
      %p45 = por %p43, %p44
      %p47 = scmp.ne.s32.totalorder %s30, %s46
      %p48 = scmp.eq.s32.totalorder %s22, 0
      %p49 = por %p47, %p48
      %s51 = sadd.s32 %s50, 1
      %p54 = scmp.eq.s32.totalorder %s16, 1
      %p55 = scmp.ne.s32.totalorder %s50, %s52
      %p56 = scmp.eq.s32.totalorder %s16, 0
      %p57 = por %p55, %p56
      %p58 = scmp.ne.s32.totalorder %s50, %s52
      %p59 = scmp.eq.s32.totalorder %s21, 1
      %p60 = por %p58, %p59
      %p61 = scmp.ne.s32.totalorder %s52, %s53
      %p62 = scmp.eq.s32.totalorder %s21, 0
      %p63 = por %p61, %p62
      %p64 = scmp.ne.s32.totalorder %s52, %s53
      %p65 = scmp.eq.s32.totalorder %s22, 1
      %p66 = por %p64, %p65
      %p68 = scmp.ne.s32.totalorder %s53, %s67
      %p69 = scmp.eq.s32.totalorder %s22, 0
      %p70 = por %p68, %p69
      %s72 = sadd.s32 %s71, 1
      %p75 = scmp.eq.s32.totalorder %s16, 1
      %p76 = scmp.ne.s32.totalorder %s71, %s73
      %p77 = scmp.eq.s32.totalorder %s16, 0
      %p78 = por %p76, %p77
      %p79 = scmp.ne.s32.totalorder %s71, %s73
      %p80 = scmp.eq.s32.totalorder %s21, 1
      %p81 = por %p79, %p80
      %p82 = scmp.ne.s32.totalorder %s73, %s74
      %p83 = scmp.eq.s32.totalorder %s21, 0
      %p84 = por %p82, %p83
      %p85 = scmp.ne.s32.totalorder %s73, %s74
      %p86 = scmp.eq.s32.totalorder %s22, 1
      %p87 = por %p85, %p86
      %p89 = scmp.ne.s32.totalorder %s74, %s88
      %p90 = scmp.eq.s32.totalorder %s22, 0
      %p91 = por %p89, %p90
      %s92 = ssub.s32 %s16, %s23
      %p93 = scmp.eq.s32.totalorder %s92, 0
      %s95 = sadd.s32 %s94, 1
      %s96 = scalar_select %p93, %s94, %s95
      %p99 = pneg %p93
      %p100 = scmp.eq.s32.totalorder %s16, 1
      %p101 = por %p99, %p100
      %p102 = scmp.ne.s32.totalorder %s94, %s97
      %p103 = scmp.eq.s32.totalorder %s16, 0
      %p104 = por %p102, %p103
      %p105 = scmp.ne.s32.totalorder %s94, %s97
      %p106 = scmp.eq.s32.totalorder %s21, 1
      %p107 = por %p105, %p106
      %p108 = scmp.ne.s32.totalorder %s97, %s98
      %p109 = scmp.eq.s32.totalorder %s21, 0
      %p110 = por %p108, %p109
      %p111 = scmp.ne.s32.totalorder %s97, %s98
      %p112 = scmp.eq.s32.totalorder %s22, 1
      %p113 = por %p111, %p112
      %p115 = scmp.ne.s32.totalorder %s98, %s114
      %p116 = scmp.eq.s32.totalorder %s22, 0
      %p117 = por %p115, %p116
      %p118 = scmp.le.s32.totalorder 1, %s16
      %p119 = scmp.lt.s32.totalorder %s16, 3
      %p120 = pnand %p118, %p119
      %p121 = pneg %p120
      // Predicated region
      $region9: #{tpu_custom_call.1} parent=5 // pred_check
        _
      $region10: #{tpu_custom_call.1} parent=5 // pred_check_branch
        %123 = sbr.rel (%p120) target = $region12
      $region11: #{tpu_custom_call.1} parent=5 // pred_region
        %s124 = ssub.s32 %s16, 1
        // Predicated region
        $region13: #{tpu_custom_call.1} parent=11 // pred_check
          %p125 = pneg %p63
        $region14: #{tpu_custom_call.1} parent=11 // pred_check_branch
          %127 = sbr.rel (%p125) target = $region16
        $region15: #{tpu_custom_call.1} parent=11 // pred_region
          %129 = vsyncadd [#allocation6], 0
          %s130 = sshll.u32 %s1, 4
          %s131 = int_to_ptr.hbm [resolvable:$true] %s130
          %s132 = sshll.u32 [#allocation5], 4
          %s133 = int_to_ptr.vmem [resolvable:$true] %s132
          %138 = dma.hbm_to_vmem [thread:$0]  %s131, 4864, %s133, [#allocation6], 1216, 1216, 76
        $region16: #{tpu_custom_call.1} parent=11 // pred_fallthru
          _
        // Predicated region
        $region17: #{tpu_custom_call.1} parent=11 // pred_check
          %p139 = pneg %p84
        $region18: #{tpu_custom_call.1} parent=11 // pred_check_branch
          %141 = sbr.rel (%p139) target = $region20
        $region19: #{tpu_custom_call.1} parent=11 // pred_region
          %143 = vsyncadd [#allocation6], 0
          %s144 = sshll.u32 %s2, 4
          %s145 = int_to_ptr.hbm [resolvable:$true] %s144
          %s146 = sshll.u32 [#allocation7], 4
          %s147 = int_to_ptr.vmem [resolvable:$true] %s146
          %152 = dma.hbm_to_vmem [thread:$0]  %s145, 384, %s147, [#allocation6], 192, 192, 12
        $region20: #{tpu_custom_call.1} parent=11 // pred_fallthru
          _
      $region12: #{tpu_custom_call.1} parent=5 // pred_fallthru
        _
      %p153 = scmp.lt.s32.totalorder %s16, 2
      // Predicated region
      $region21: #{tpu_custom_call.1} parent=5 // pred_check
        %p154 = pneg %p153
      $region22: #{tpu_custom_call.1} parent=5 // pred_check_branch
        %156 = sbr.rel (%p154) target = $region24
      $region23: #{tpu_custom_call.1} parent=5 // pred_region
        // Predicated region
        $region25: #{tpu_custom_call.1} parent=23 // pred_check
          %p157 = pneg %p36
        $region26: #{tpu_custom_call.1} parent=23 // pred_check_branch
          %159 = sbr.rel (%p157) target = $region28
        $region27: #{tpu_custom_call.1} parent=23 // pred_region
          %s160 = sand.u32 %s26, 1
          %s161 = scalar_lea.sflag [#allocation3], %s160
          %s162 = sand.u32 %s26, 1
          %s163 = smul.addr %s162, 16
          %s164 = scalar_lea.vmem [#allocation2], %s163
          %166 = vsyncadd %s161, 0
          %s167 = smul.addr %s16, 2
          %s168 = smul.addr %s167, 8
          %s169 = scalar_lea.hbm %s0, %s168
          %s170 = sshll.u32 %s169, 4
          %s171 = int_to_ptr.hbm [resolvable:$true] %s170
          %s172 = sshll.u32 %s164, 4
          %s173 = int_to_ptr.vmem [resolvable:$true] %s172
          %178 = dma.hbm_to_vmem [thread:$0]  %s171, 256, %s173, %s161, 128, 128, 8
        $region28: #{tpu_custom_call.1} parent=23 // pred_fallthru
          _
      $region24: #{tpu_custom_call.1} parent=5 // pred_fallthru
        _
      %p179 = scmp.le.s32.totalorder 1, %s16
      %p180 = scmp.lt.s32.totalorder %s16, 3
      %p181 = pnand %p179, %p180
      %p182 = pneg %p181
      // Predicated region
      $region29: #{tpu_custom_call.1} parent=5 // pred_check
        _
      $region30: #{tpu_custom_call.1} parent=5 // pred_check_branch
        %184 = sbr.rel (%p181) target = $region32
      $region31: #{tpu_custom_call.1} parent=5 // pred_region
        %s185 = ssub.s32 %s16, 1
        %s186 = sand.u32 %s29, 1
        %s187 = scalar_lea.sflag [#allocation3], %s186
        %s188 = sand.u32 %s29, 1
        %s189 = smul.addr %s188, 16
        %s190 = scalar_lea.vmem [#allocation2], %s189
        // Predicated region
        $region33: #{tpu_custom_call.1} parent=31 // pred_check
          %p191 = pneg %p42
        $region34: #{tpu_custom_call.1} parent=31 // pred_check_branch
          %193 = sbr.rel (%p191) target = $region36
        $region35: #{tpu_custom_call.1} parent=31 // pred_region
          %195 = dma.done %s187, 256
        $region36: #{tpu_custom_call.1} parent=31 // pred_fallthru
          _
        // Predicated region
        $region37: #{tpu_custom_call.1} parent=31 // pred_check
          %p196 = pneg %p63
        $region38: #{tpu_custom_call.1} parent=31 // pred_check_branch
          %198 = sbr.rel (%p196) target = $region40
        $region39: #{tpu_custom_call.1} parent=31 // pred_region
          %200 = dma.done [#allocation6], 4864
        $region40: #{tpu_custom_call.1} parent=31 // pred_fallthru
          _
        // Predicated region
        $region41: #{tpu_custom_call.1} parent=31 // pred_check
          %p201 = pneg %p84
        $region42: #{tpu_custom_call.1} parent=31 // pred_check_branch
          %203 = sbr.rel (%p201) target = $region44
        $region43: #{tpu_custom_call.1} parent=31 // pred_region
          %205 = dma.done [#allocation6], 384
        $region44: #{tpu_custom_call.1} parent=31 // pred_fallthru
          _
        %s206 = sand.u32 %s29, 1
        %s207 = scalar_lea.sflag [#allocation3], %s206
        %s208 = sand.u32 %s29, 1
        %s209 = smul.addr %s208, 16
        %s210 = scalar_lea.vmem [#allocation2], %s209
        %p211 = pneg %p42
        %p212 = pneg %p39
        %p213 = pneg %p63
        %p214 = pneg %p60
        %p215 = pneg %p84
        %p216 = pneg %p81
        %p217 = pneg %p110
        %p218 = pneg %p107
        %s219 = sand.u32 %s97, 1
        %s220 = scalar_lea.sflag [#allocation4], %s219
        %s221 = sand.u32 %s97, 1
        %s222 = smul.addr %s221, 16
        %s223 = scalar_lea.vmem [#allocation8], %s222
        %v225 = vld [vmem:[%s190] sm:$0xff]
        %v226 = vld [vmem:[%s190 + $0x8] sm:$0xff]
        %v227 = vpack.c.bf16 %v226, %v225
        %v228 = vld [vmem:[#allocation5] sm:$0xff]
        %v229 = vld [vmem:[#allocation5 + $0x8] sm:$0xff]
        %v230 = vld [vmem:[#allocation5 + $0x10] sm:$0xff]
        %v231 = vld [vmem:[#allocation5 + $0x18] sm:$0xff]
        %v232 = vld [vmem:[#allocation5 + $0x20] sm:$0xff]
        %v233 = vld [vmem:[#allocation5 + $0x28] sm:$0xff]
        %v234 = vld [vmem:[#allocation5 + $0x30] sm:$0xff]
        %v235 = vld [vmem:[#allocation5 + $0x38] sm:$0xff]
        %v236 = vld [vmem:[#allocation5 + $0x40] sm:$0xff]
        %v237 = vld [vmem:[#allocation5 + $0x48] sm:$0xf]
        %v238 = vld [vmem:[#allocation5 + $0x4c] sm:$0xff]
        %v239 = vld [vmem:[#allocation5 + $0x54] sm:$0xff]
        %v240 = vld [vmem:[#allocation5 + $0x5c] sm:$0xff]
        %v241 = vld [vmem:[#allocation5 + $0x64] sm:$0xff]
        %v242 = vld [vmem:[#allocation5 + $0x6c] sm:$0xff]
        %v243 = vld [vmem:[#allocation5 + $0x74] sm:$0xff]
        %v244 = vld [vmem:[#allocation5 + $0x7c] sm:$0xff]
        %v245 = vld [vmem:[#allocation5 + $0x84] sm:$0xff]
        %v246 = vld [vmem:[#allocation5 + $0x8c] sm:$0xff]
        %v247 = vld [vmem:[#allocation5 + $0x94] sm:$0xf]
        %v248 = vld [vmem:[#allocation5 + $0x98] sm:$0xff]
        %v249 = vld [vmem:[#allocation5 + $0xa0] sm:$0xff]
        %v250 = vld [vmem:[#allocation5 + $0xa8] sm:$0xff]
        %v251 = vld [vmem:[#allocation5 + $0xb0] sm:$0xff]
        %v252 = vld [vmem:[#allocation5 + $0xb8] sm:$0xff]
        %v253 = vld [vmem:[#allocation5 + $0xc0] sm:$0xff]
        %v254 = vld [vmem:[#allocation5 + $0xc8] sm:$0xff]
        %v255 = vld [vmem:[#allocation5 + $0xd0] sm:$0xff]
        %v256 = vld [vmem:[#allocation5 + $0xd8] sm:$0xff]
        %v257 = vld [vmem:[#allocation5 + $0xe0] sm:$0xf]
        %v258 = vld [vmem:[#allocation5 + $0xe4] sm:$0xff]
        %v259 = vld [vmem:[#allocation5 + $0xec] sm:$0xff]
        %v260 = vld [vmem:[#allocation5 + $0xf4] sm:$0xff]
        %v261 = vld [vmem:[#allocation5 + $0xfc] sm:$0xff]
        %v262 = vld [vmem:[#allocation5 + $0x104] sm:$0xff]
        %v263 = vld [vmem:[#allocation5 + $0x10c] sm:$0xff]
        %v264 = vld [vmem:[#allocation5 + $0x114] sm:$0xff]
        %v265 = vld [vmem:[#allocation5 + $0x11c] sm:$0xff]
        %v266 = vld [vmem:[#allocation5 + $0x124] sm:$0xff]
        %v267 = vld [vmem:[#allocation5 + $0x12c] sm:$0xf]
        %v308 = vunpack.c.l.b16 %v228
        %v309 = vunpack.c.h.b16 %v228
        %v310 = vunpack.c.l.b16 %v229
        %v311 = vunpack.c.h.b16 %v229
        %v312 = vunpack.c.l.b16 %v230
        %v313 = vunpack.c.h.b16 %v230
        %v314 = vunpack.c.l.b16 %v231
        %v315 = vunpack.c.h.b16 %v231
        %v316 = vunpack.c.l.b16 %v232
        %v317 = vunpack.c.h.b16 %v232
        %v318 = vunpack.c.l.b16 %v233
        %v319 = vunpack.c.h.b16 %v233
        %v320 = vunpack.c.l.b16 %v234
        %v321 = vunpack.c.h.b16 %v234
        %v322 = vunpack.c.l.b16 %v235
        %v323 = vunpack.c.h.b16 %v235
        %v324 = vunpack.c.l.b16 %v236
        %v325 = vunpack.c.h.b16 %v236
        %v326 = vunpack.c.l.b16 %v237
        %v327 = vunpack.c.l.b16 %v238
        %v328 = vunpack.c.h.b16 %v238
        %v329 = vunpack.c.l.b16 %v239
        %v330 = vunpack.c.h.b16 %v239
        %v331 = vunpack.c.l.b16 %v240
        %v332 = vunpack.c.h.b16 %v240
        %v333 = vunpack.c.l.b16 %v241
        %v334 = vunpack.c.h.b16 %v241
        %v335 = vunpack.c.l.b16 %v242
        %v336 = vunpack.c.h.b16 %v242
        %v337 = vunpack.c.l.b16 %v243
        %v338 = vunpack.c.h.b16 %v243
        %v339 = vunpack.c.l.b16 %v244
        %v340 = vunpack.c.h.b16 %v244
        %v341 = vunpack.c.l.b16 %v245
        %v342 = vunpack.c.h.b16 %v245
        %v343 = vunpack.c.l.b16 %v246
        %v344 = vunpack.c.h.b16 %v246
        %v345 = vunpack.c.l.b16 %v247
        %v346 = vunpack.c.l.b16 %v248
        %v347 = vunpack.c.h.b16 %v248
        %v348 = vunpack.c.l.b16 %v249
        %v349 = vunpack.c.h.b16 %v249
        %v350 = vunpack.c.l.b16 %v250
        %v351 = vunpack.c.h.b16 %v250
        %v352 = vunpack.c.l.b16 %v251
        %v353 = vunpack.c.h.b16 %v251
        %v354 = vunpack.c.l.b16 %v252
        %v355 = vunpack.c.h.b16 %v252
        %v356 = vunpack.c.l.b16 %v253
        %v357 = vunpack.c.h.b16 %v253
        %v358 = vunpack.c.l.b16 %v254
        %v359 = vunpack.c.h.b16 %v254
        %v360 = vunpack.c.l.b16 %v255
        %v361 = vunpack.c.h.b16 %v255
        %v362 = vunpack.c.l.b16 %v256
        %v363 = vunpack.c.h.b16 %v256
        %v364 = vunpack.c.l.b16 %v257
        %v365 = vunpack.c.l.b16 %v258
        %v366 = vunpack.c.h.b16 %v258
        %v367 = vunpack.c.l.b16 %v259
        %v368 = vunpack.c.h.b16 %v259
        %v369 = vunpack.c.l.b16 %v260
        %v370 = vunpack.c.h.b16 %v260
        %v371 = vunpack.c.l.b16 %v261
        %v372 = vunpack.c.h.b16 %v261
        %v373 = vunpack.c.l.b16 %v262
        %v374 = vunpack.c.h.b16 %v262
        %v375 = vunpack.c.l.b16 %v263
        %v376 = vunpack.c.h.b16 %v263
        %v377 = vunpack.c.l.b16 %v264
        %v378 = vunpack.c.h.b16 %v264
        %v379 = vunpack.c.l.b16 %v265
        %v380 = vunpack.c.h.b16 %v265
        %v381 = vunpack.c.l.b16 %v266
        %v382 = vunpack.c.h.b16 %v266
        %v383 = vunpack.c.l.b16 %v267
        %v384 = vpack.c.b16 %v327, %v308
        %v385 = vpack.c.b16 %v328, %v309
        %v386 = vpack.c.b16 %v329, %v310
        %v387 = vpack.c.b16 %v330, %v311
        %v388 = vpack.c.b16 %v331, %v312
        %v389 = vpack.c.b16 %v332, %v313
        %v390 = vpack.c.b16 %v333, %v314
        %v391 = vpack.c.b16 %v334, %v315
        %v392 = vpack.c.b16 %v335, %v316
        %v393 = vpack.c.b16 %v336, %v317
        %v394 = vpack.c.b16 %v337, %v318
        %v395 = vpack.c.b16 %v338, %v319
        %v396 = vpack.c.b16 %v339, %v320
        %v397 = vpack.c.b16 %v340, %v321
        %v398 = vpack.c.b16 %v341, %v322
        %v399 = vpack.c.b16 %v342, %v323
        %v400 = vpack.c.b16 %v343, %v324
        %v401 = vpack.c.b16 %v344, %v325
        %v402 = vpack.c.b16 %v345, %v326
        %v403 = vpack.c.b16 %v365, %v346
        %v404 = vpack.c.b16 %v366, %v347
        %v405 = vpack.c.b16 %v367, %v348
        %v406 = vpack.c.b16 %v368, %v349
        %v407 = vpack.c.b16 %v369, %v350
        %v408 = vpack.c.b16 %v370, %v351
        %v409 = vpack.c.b16 %v371, %v352
        %v410 = vpack.c.b16 %v372, %v353
        %v411 = vpack.c.b16 %v373, %v354
        %v412 = vpack.c.b16 %v374, %v355
        %v413 = vpack.c.b16 %v375, %v356
        %v414 = vpack.c.b16 %v376, %v357
        %v415 = vpack.c.b16 %v377, %v358
        %v416 = vpack.c.b16 %v378, %v359
        %v417 = vpack.c.b16 %v379, %v360
        %v418 = vpack.c.b16 %v380, %v361
        %v419 = vpack.c.b16 %v381, %v362
        %v420 = vpack.c.b16 %v382, %v363
        %v421 = vpack.c.b16 %v383, %v364
        %vm460 = vcmask 261120
        %v462 = vsel %vm460, %v227, 0
        %464 = vmatpush.bf16.msra.mxu0 0
        %465 = vmatpush.bf16.msra.mxu0 0
        %466 = vmatpush.bf16.msra.mxu0 0
        %467 = vmatpush.bf16.msra.mxu0 0
        %468 = vmatpush.bf16.msra.mxu0 0
        %469 = vmatpush.bf16.msra.mxu0 0
        %470 = vmatpush.bf16.msra.mxu0 %v403
        %471 = vmatpush.bf16.msra.mxu0 %v384
        %472 = vmatmul.bf16.gmra.mxu0 %v462
        %v473 = vpop.f32.mrf.mxu0
        %v474 = vadd.f32 0.0, %v473
        %v475 = vpop.f32.mrf.mxu0
        %v476 = vadd.f32 0.0, %v475
        %477 = vdwg.mxu0
        %478 = vmatpush.bf16.msra.mxu0 0
        %479 = vmatpush.bf16.msra.mxu0 0
        %480 = vmatpush.bf16.msra.mxu0 0
        %481 = vmatpush.bf16.msra.mxu0 0
        %482 = vmatpush.bf16.msra.mxu0 0
        %483 = vmatpush.bf16.msra.mxu0 0
        %484 = vmatpush.bf16.msra.mxu0 %v404
        %485 = vmatpush.bf16.msra.mxu0 %v385
        %486 = vmatmul.bf16.gmra.mxu0 %v462
        %v487 = vpop.f32.mrf.mxu0
        %v488 = vadd.f32 0.0, %v487
        %v489 = vpop.f32.mrf.mxu0
        %v490 = vadd.f32 0.0, %v489
        %491 = vdwg.mxu0
        %492 = vmatpush.bf16.msra.mxu0 0
        %493 = vmatpush.bf16.msra.mxu0 0
        %494 = vmatpush.bf16.msra.mxu0 0
        %495 = vmatpush.bf16.msra.mxu0 0
        %496 = vmatpush.bf16.msra.mxu0 0
        %497 = vmatpush.bf16.msra.mxu0 0
        %498 = vmatpush.bf16.msra.mxu0 %v405
        %499 = vmatpush.bf16.msra.mxu0 %v386
        %500 = vmatmul.bf16.gmra.mxu0 %v462
        %v501 = vpop.f32.mrf.mxu0
        %v502 = vadd.f32 0.0, %v501
        %v503 = vpop.f32.mrf.mxu0
        %v504 = vadd.f32 0.0, %v503
        %505 = vdwg.mxu0
        %506 = vmatpush.bf16.msra.mxu0 0
        %507 = vmatpush.bf16.msra.mxu0 0
        %508 = vmatpush.bf16.msra.mxu0 0
        %509 = vmatpush.bf16.msra.mxu0 0
        %510 = vmatpush.bf16.msra.mxu0 0
        %511 = vmatpush.bf16.msra.mxu0 0
        %512 = vmatpush.bf16.msra.mxu0 %v406
        %513 = vmatpush.bf16.msra.mxu0 %v387
        %514 = vmatmul.bf16.gmra.mxu0 %v462
        %v515 = vpop.f32.mrf.mxu0
        %v516 = vadd.f32 0.0, %v515
        %v517 = vpop.f32.mrf.mxu0
        %v518 = vadd.f32 0.0, %v517
        %519 = vdwg.mxu0
        %520 = vmatpush.bf16.msra.mxu0 0
        %521 = vmatpush.bf16.msra.mxu0 0
        %522 = vmatpush.bf16.msra.mxu0 0
        %523 = vmatpush.bf16.msra.mxu0 0
        %524 = vmatpush.bf16.msra.mxu0 0
        %525 = vmatpush.bf16.msra.mxu0 0
        %526 = vmatpush.bf16.msra.mxu0 %v407
        %527 = vmatpush.bf16.msra.mxu0 %v388
        %528 = vmatmul.bf16.gmra.mxu0 %v462
        %v529 = vpop.f32.mrf.mxu0
        %v530 = vadd.f32 0.0, %v529
        %v531 = vpop.f32.mrf.mxu0
        %v532 = vadd.f32 0.0, %v531
        %533 = vdwg.mxu0
        %534 = vmatpush.bf16.msra.mxu0 0
        %535 = vmatpush.bf16.msra.mxu0 0
        %536 = vmatpush.bf16.msra.mxu0 0
        %537 = vmatpush.bf16.msra.mxu0 0
        %538 = vmatpush.bf16.msra.mxu0 0
        %539 = vmatpush.bf16.msra.mxu0 0
        %540 = vmatpush.bf16.msra.mxu0 %v408
        %541 = vmatpush.bf16.msra.mxu0 %v389
        %542 = vmatmul.bf16.gmra.mxu0 %v462
        %v543 = vpop.f32.mrf.mxu0
        %v544 = vadd.f32 0.0, %v543
        %v545 = vpop.f32.mrf.mxu0
        %v546 = vadd.f32 0.0, %v545
        %547 = vdwg.mxu0
        %548 = vmatpush.bf16.msra.mxu0 0
        %549 = vmatpush.bf16.msra.mxu0 0
        %550 = vmatpush.bf16.msra.mxu0 0
        %551 = vmatpush.bf16.msra.mxu0 0
        %552 = vmatpush.bf16.msra.mxu0 0
        %553 = vmatpush.bf16.msra.mxu0 0
        %554 = vmatpush.bf16.msra.mxu0 %v409
        %555 = vmatpush.bf16.msra.mxu0 %v390
        %556 = vmatmul.bf16.gmra.mxu0 %v462
        %v557 = vpop.f32.mrf.mxu0
        %v558 = vadd.f32 0.0, %v557
        %v559 = vpop.f32.mrf.mxu0
        %v560 = vadd.f32 0.0, %v559
        %561 = vdwg.mxu0
        %562 = vmatpush.bf16.msra.mxu0 0
        %563 = vmatpush.bf16.msra.mxu0 0
        %564 = vmatpush.bf16.msra.mxu0 0
        %565 = vmatpush.bf16.msra.mxu0 0
        %566 = vmatpush.bf16.msra.mxu0 0
        %567 = vmatpush.bf16.msra.mxu0 0
        %568 = vmatpush.bf16.msra.mxu0 %v410
        %569 = vmatpush.bf16.msra.mxu0 %v391
        %570 = vmatmul.bf16.gmra.mxu0 %v462
        %v571 = vpop.f32.mrf.mxu0
        %v572 = vadd.f32 0.0, %v571
        %v573 = vpop.f32.mrf.mxu0
        %v574 = vadd.f32 0.0, %v573
        %575 = vdwg.mxu0
        %576 = vmatpush.bf16.msra.mxu0 0
        %577 = vmatpush.bf16.msra.mxu0 0
        %578 = vmatpush.bf16.msra.mxu0 0
        %579 = vmatpush.bf16.msra.mxu0 0
        %580 = vmatpush.bf16.msra.mxu0 0
        %581 = vmatpush.bf16.msra.mxu0 0
        %582 = vmatpush.bf16.msra.mxu0 %v411
        %583 = vmatpush.bf16.msra.mxu0 %v392
        %584 = vmatmul.bf16.gmra.mxu0 %v462
        %v585 = vpop.f32.mrf.mxu0
        %v586 = vadd.f32 0.0, %v585
        %v587 = vpop.f32.mrf.mxu0
        %v588 = vadd.f32 0.0, %v587
        %589 = vdwg.mxu0
        %590 = vmatpush.bf16.msra.mxu0 0
        %591 = vmatpush.bf16.msra.mxu0 0
        %592 = vmatpush.bf16.msra.mxu0 0
        %593 = vmatpush.bf16.msra.mxu0 0
        %594 = vmatpush.bf16.msra.mxu0 0
        %595 = vmatpush.bf16.msra.mxu0 0
        %596 = vmatpush.bf16.msra.mxu0 %v412
        %597 = vmatpush.bf16.msra.mxu0 %v393
        %598 = vmatmul.bf16.gmra.mxu0 %v462
        %v599 = vpop.f32.mrf.mxu0
        %v600 = vadd.f32 0.0, %v599
        %v601 = vpop.f32.mrf.mxu0
        %v602 = vadd.f32 0.0, %v601
        %603 = vdwg.mxu0
        %604 = vmatpush.bf16.msra.mxu0 0
        %605 = vmatpush.bf16.msra.mxu0 0
        %606 = vmatpush.bf16.msra.mxu0 0
        %607 = vmatpush.bf16.msra.mxu0 0
        %608 = vmatpush.bf16.msra.mxu0 0
        %609 = vmatpush.bf16.msra.mxu0 0
        %610 = vmatpush.bf16.msra.mxu0 %v413
        %611 = vmatpush.bf16.msra.mxu0 %v394
        %612 = vmatmul.bf16.gmra.mxu0 %v462
        %v613 = vpop.f32.mrf.mxu0
        %v614 = vadd.f32 0.0, %v613
        %v615 = vpop.f32.mrf.mxu0
        %v616 = vadd.f32 0.0, %v615
        %617 = vdwg.mxu0
        %618 = vmatpush.bf16.msra.mxu0 0
        %619 = vmatpush.bf16.msra.mxu0 0
        %620 = vmatpush.bf16.msra.mxu0 0
        %621 = vmatpush.bf16.msra.mxu0 0
        %622 = vmatpush.bf16.msra.mxu0 0
        %623 = vmatpush.bf16.msra.mxu0 0
        %624 = vmatpush.bf16.msra.mxu0 %v414
        %625 = vmatpush.bf16.msra.mxu0 %v395
        %626 = vmatmul.bf16.gmra.mxu0 %v462
        %v627 = vpop.f32.mrf.mxu0
        %v628 = vadd.f32 0.0, %v627
        %v629 = vpop.f32.mrf.mxu0
        %v630 = vadd.f32 0.0, %v629
        %631 = vdwg.mxu0
        %632 = vmatpush.bf16.msra.mxu0 0
        %633 = vmatpush.bf16.msra.mxu0 0
        %634 = vmatpush.bf16.msra.mxu0 0
        %635 = vmatpush.bf16.msra.mxu0 0
        %636 = vmatpush.bf16.msra.mxu0 0
        %637 = vmatpush.bf16.msra.mxu0 0
        %638 = vmatpush.bf16.msra.mxu0 %v415
        %639 = vmatpush.bf16.msra.mxu0 %v396
        %640 = vmatmul.bf16.gmra.mxu0 %v462
        %v641 = vpop.f32.mrf.mxu0
        %v642 = vadd.f32 0.0, %v641
        %v643 = vpop.f32.mrf.mxu0
        %v644 = vadd.f32 0.0, %v643
        %645 = vdwg.mxu0
        %646 = vmatpush.bf16.msra.mxu0 0
        %647 = vmatpush.bf16.msra.mxu0 0
        %648 = vmatpush.bf16.msra.mxu0 0
        %649 = vmatpush.bf16.msra.mxu0 0
        %650 = vmatpush.bf16.msra.mxu0 0
        %651 = vmatpush.bf16.msra.mxu0 0
        %652 = vmatpush.bf16.msra.mxu0 %v416
        %653 = vmatpush.bf16.msra.mxu0 %v397
        %654 = vmatmul.bf16.gmra.mxu0 %v462
        %v655 = vpop.f32.mrf.mxu0
        %v656 = vadd.f32 0.0, %v655
        %v657 = vpop.f32.mrf.mxu0
        %v658 = vadd.f32 0.0, %v657
        %659 = vdwg.mxu0
        %660 = vmatpush.bf16.msra.mxu0 0
        %661 = vmatpush.bf16.msra.mxu0 0
        %662 = vmatpush.bf16.msra.mxu0 0
        %663 = vmatpush.bf16.msra.mxu0 0
        %664 = vmatpush.bf16.msra.mxu0 0
        %665 = vmatpush.bf16.msra.mxu0 0
        %666 = vmatpush.bf16.msra.mxu0 %v417
        %667 = vmatpush.bf16.msra.mxu0 %v398
        %668 = vmatmul.bf16.gmra.mxu0 %v462
        %v669 = vpop.f32.mrf.mxu0
        %v670 = vadd.f32 0.0, %v669
        %v671 = vpop.f32.mrf.mxu0
        %v672 = vadd.f32 0.0, %v671
        %673 = vdwg.mxu0
        %674 = vmatpush.bf16.msra.mxu0 0
        %675 = vmatpush.bf16.msra.mxu0 0
        %676 = vmatpush.bf16.msra.mxu0 0
        %677 = vmatpush.bf16.msra.mxu0 0
        %678 = vmatpush.bf16.msra.mxu0 0
        %679 = vmatpush.bf16.msra.mxu0 0
        %680 = vmatpush.bf16.msra.mxu0 %v418
        %681 = vmatpush.bf16.msra.mxu0 %v399
        %682 = vmatmul.bf16.gmra.mxu0 %v462
        %v683 = vpop.f32.mrf.mxu0
        %v684 = vadd.f32 0.0, %v683
        %v685 = vpop.f32.mrf.mxu0
        %v686 = vadd.f32 0.0, %v685
        %687 = vdwg.mxu0
        %688 = vmatpush.bf16.msra.mxu0 0
        %689 = vmatpush.bf16.msra.mxu0 0
        %690 = vmatpush.bf16.msra.mxu0 0
        %691 = vmatpush.bf16.msra.mxu0 0
        %692 = vmatpush.bf16.msra.mxu0 0
        %693 = vmatpush.bf16.msra.mxu0 0
        %694 = vmatpush.bf16.msra.mxu0 %v419
        %695 = vmatpush.bf16.msra.mxu0 %v400
        %696 = vmatmul.bf16.gmra.mxu0 %v462
        %v697 = vpop.f32.mrf.mxu0
        %v698 = vadd.f32 0.0, %v697
        %v699 = vpop.f32.mrf.mxu0
        %v700 = vadd.f32 0.0, %v699
        %701 = vdwg.mxu0
        %702 = vmatpush.bf16.msra.mxu0 0
        %703 = vmatpush.bf16.msra.mxu0 0
        %704 = vmatpush.bf16.msra.mxu0 0
        %705 = vmatpush.bf16.msra.mxu0 0
        %706 = vmatpush.bf16.msra.mxu0 0
        %707 = vmatpush.bf16.msra.mxu0 0
        %708 = vmatpush.bf16.msra.mxu0 %v420
        %709 = vmatpush.bf16.msra.mxu0 %v401
        %710 = vmatmul.bf16.gmra.mxu0 %v462
        %v711 = vpop.f32.mrf.mxu0
        %v712 = vadd.f32 0.0, %v711
        %v713 = vpop.f32.mrf.mxu0
        %v714 = vadd.f32 0.0, %v713
        %715 = vdwg.mxu0
        %716 = vmatpush.bf16.msra.mxu0 0
        %717 = vmatpush.bf16.msra.mxu0 0
        %718 = vmatpush.bf16.msra.mxu0 0
        %719 = vmatpush.bf16.msra.mxu0 0
        %720 = vmatpush.bf16.msra.mxu0 0
        %721 = vmatpush.bf16.msra.mxu0 0
        %722 = vmatpush.bf16.msra.mxu0 %v421
        %723 = vmatpush.bf16.msra.mxu0 %v402
        %724 = vmatmul.bf16.gmra.mxu0 %v462
        %v725 = vpop.f32.mrf.mxu0
        %v726 = vadd.f32 0.0, %v725
        %v727 = vpop.f32.mrf.mxu0
        %v728 = vadd.f32 0.0, %v727
        %729 = vdwg.mxu0
        %v730 = vpack.c.bf16 %v488, %v474
        %v731 = vpack.c.bf16 %v516, %v502
        %v732 = vpack.c.bf16 %v544, %v530
        %v733 = vpack.c.bf16 %v572, %v558
        %v734 = vpack.c.bf16 %v600, %v586
        %v735 = vpack.c.bf16 %v628, %v614
        %v736 = vpack.c.bf16 %v656, %v642
        %v737 = vpack.c.bf16 %v684, %v670
        %v738 = vpack.c.bf16 %v712, %v698
        %v739 = vpack.c.bf16 %v726, %v726
        %v740 = vpack.c.bf16 %v490, %v476
        %v741 = vpack.c.bf16 %v518, %v504
        %v742 = vpack.c.bf16 %v546, %v532
        %v743 = vpack.c.bf16 %v574, %v560
        %v744 = vpack.c.bf16 %v602, %v588
        %v745 = vpack.c.bf16 %v630, %v616
        %v746 = vpack.c.bf16 %v658, %v644
        %v747 = vpack.c.bf16 %v686, %v672
        %v748 = vpack.c.bf16 %v714, %v700
        %v749 = vpack.c.bf16 %v728, %v728
        %v752 = vunpack.c.l.b16 %v730
        %v753 = vunpack.c.l.b16 %v740
        %v754 = vpack.c.b16 %v753, %v752
        %v756 = vunpack.c.h.b16 %v730
        %v757 = vunpack.c.h.b16 %v740
        %v758 = vpack.c.b16 %v757, %v756
        %v762 = vunpack.c.l.b16 %v731
        %v763 = vunpack.c.l.b16 %v741
        %v764 = vpack.c.b16 %v763, %v762
        %v766 = vunpack.c.h.b16 %v731
        %v767 = vunpack.c.h.b16 %v741
        %v768 = vpack.c.b16 %v767, %v766
        %v772 = vunpack.c.l.b16 %v732
        %v773 = vunpack.c.l.b16 %v742
        %v774 = vpack.c.b16 %v773, %v772
        %v776 = vunpack.c.h.b16 %v732
        %v777 = vunpack.c.h.b16 %v742
        %v778 = vpack.c.b16 %v777, %v776
        %v782 = vunpack.c.l.b16 %v733
        %v783 = vunpack.c.l.b16 %v743
        %v784 = vpack.c.b16 %v783, %v782
        %v786 = vunpack.c.h.b16 %v733
        %v787 = vunpack.c.h.b16 %v743
        %v788 = vpack.c.b16 %v787, %v786
        %v792 = vunpack.c.l.b16 %v734
        %v793 = vunpack.c.l.b16 %v744
        %v794 = vpack.c.b16 %v793, %v792
        %v796 = vunpack.c.h.b16 %v734
        %v797 = vunpack.c.h.b16 %v744
        %v798 = vpack.c.b16 %v797, %v796
        %v802 = vunpack.c.l.b16 %v735
        %v803 = vunpack.c.l.b16 %v745
        %v804 = vpack.c.b16 %v803, %v802
        %v806 = vunpack.c.h.b16 %v735
        %v807 = vunpack.c.h.b16 %v745
        %v808 = vpack.c.b16 %v807, %v806
        %v812 = vunpack.c.l.b16 %v736
        %v813 = vunpack.c.l.b16 %v746
        %v814 = vpack.c.b16 %v813, %v812
        %v816 = vunpack.c.h.b16 %v736
        %v817 = vunpack.c.h.b16 %v746
        %v818 = vpack.c.b16 %v817, %v816
        %v822 = vunpack.c.l.b16 %v737
        %v823 = vunpack.c.l.b16 %v747
        %v824 = vpack.c.b16 %v823, %v822
        %v826 = vunpack.c.h.b16 %v737
        %v827 = vunpack.c.h.b16 %v747
        %v828 = vpack.c.b16 %v827, %v826
        %v832 = vunpack.c.l.b16 %v738
        %v833 = vunpack.c.l.b16 %v748
        %v834 = vpack.c.b16 %v833, %v832
        %v836 = vunpack.c.h.b16 %v738
        %v837 = vunpack.c.h.b16 %v748
        %v838 = vpack.c.b16 %v837, %v836
        %v842 = vunpack.c.l.b16 %v739
        %v843 = vunpack.c.l.b16 %v749
        %v844 = vpack.c.b16 %v843, %v842
        %v846 = vld [vmem:[#allocation7] sm:$0xff]
        %v847 = vld [vmem:[#allocation7 + $0x8] sm:$0xf]
        %v848 = vld [vmem:[#allocation7 + $0xc] sm:$0xff]
        %v849 = vld [vmem:[#allocation7 + $0x14] sm:$0xf]
        %v854 = vunpack.c.l.b16 %v846
        %v855 = vunpack.c.h.b16 %v846
        %v856 = vunpack.c.l.b16 %v847
        %v857 = vunpack.c.l.b16 %v848
        %v858 = vunpack.c.h.b16 %v848
        %v859 = vunpack.c.l.b16 %v849
        %v860 = vpack.c.b16 %v857, %v854
        %v861 = vpack.c.b16 %v858, %v855
        %v862 = vpack.c.b16 %v859, %v856
        %vm865 = vcmask 392192
        %v867 = vsel %vm865, %v862, 0
        %869 = vmatpush.bf16.msra.mxu0 %v788
        %870 = vmatpush.bf16.msra.mxu0 %v784
        %871 = vmatpush.bf16.msra.mxu0 %v778
        %872 = vmatpush.bf16.msra.mxu0 %v774
        %873 = vmatpush.bf16.msra.mxu0 %v768
        %874 = vmatpush.bf16.msra.mxu0 %v764
        %875 = vmatpush.bf16.msra.mxu0 %v758
        %876 = vmatpush.bf16.msra.mxu0 %v754
        %877 = vmatmul.bf16.gmra.mxu0 %v860
        %v878 = vpop.f32.mrf.mxu0
        %v879 = vadd.f32 0.0, %v878
        %v880 = vpop.f32.mrf.mxu0
        %v881 = vadd.f32 0.0, %v880
        %882 = vdwg.mxu0
        %883 = vmatpush.bf16.msra.mxu0 %v828
        %884 = vmatpush.bf16.msra.mxu0 %v824
        %885 = vmatpush.bf16.msra.mxu0 %v818
        %886 = vmatpush.bf16.msra.mxu0 %v814
        %887 = vmatpush.bf16.msra.mxu0 %v808
        %888 = vmatpush.bf16.msra.mxu0 %v804
        %889 = vmatpush.bf16.msra.mxu0 %v798
        %890 = vmatpush.bf16.msra.mxu0 %v794
        %891 = vmatmul.bf16.gmra.mxu0 %v861
        %v892 = vpop.f32.mrf.mxu0
        %v893 = vadd.f32 %v879, %v892
        %v894 = vpop.f32.mrf.mxu0
        %v895 = vadd.f32 %v881, %v894
        %896 = vdwg.mxu0
        %897 = vmatpush.bf16.msra.mxu0 0
        %898 = vmatpush.bf16.msra.mxu0 0
        %899 = vmatpush.bf16.msra.mxu0 0
        %900 = vmatpush.bf16.msra.mxu0 0
        %901 = vmatpush.bf16.msra.mxu0 0
        %902 = vmatpush.bf16.msra.mxu0 %v844
        %903 = vmatpush.bf16.msra.mxu0 %v838
        %904 = vmatpush.bf16.msra.mxu0 %v834
        %905 = vmatmul.bf16.gmra.mxu0 %v867
        %v906 = vpop.f32.mrf.mxu0
        %v907 = vadd.f32 %v893, %v906
        %v908 = vpop.f32.mrf.mxu0
        %v909 = vadd.f32 %v895, %v908
        %910 = vdwg.mxu0
        %911 = vst [vmem:[%s223] sm:$0xff] %v907
        %912 = vst [vmem:[%s223 + $0x8] sm:$0xff] %v909
        %s913 = sand.u32 %s97, 1
        %s914 = scalar_lea.sflag [#allocation4], %s913
        %s915 = sand.u32 %s97, 1
        %s916 = smul.addr %s915, 16
        %s917 = scalar_lea.vmem [#allocation8], %s916
        // Predicated region
        $region45: #{tpu_custom_call.1} parent=31 // pred_check
          %p918 = pneg %p107
        $region46: #{tpu_custom_call.1} parent=31 // pred_check_branch
          %920 = sbr.rel (%p918) target = $region48
        $region47: #{tpu_custom_call.1} parent=31 // pred_region
          %922 = vsyncadd %s914, 0
          %s923 = smul.addr %s21, 2
          %s924 = smul.addr %s923, 8
          %s925 = scalar_lea.hbm %s3, %s924
          %s926 = sshll.u32 %s917, 4
          %s927 = int_to_ptr.vmem [resolvable:$true] %s926
          %s928 = sshll.u32 %s925, 4
          %s929 = int_to_ptr.hbm [resolvable:$true] %s928
          %934 = dma.vmem_to_hbm [thread:$0]  %s927, 256, %s929, %s914, 128, 128, 8
        $region48: #{tpu_custom_call.1} parent=31 // pred_fallthru
          _
      $region32: #{tpu_custom_call.1} parent=5 // pred_fallthru
        _
      %p935 = scmp.le.s32.totalorder 2, %s16
      // Predicated region
      $region49: #{tpu_custom_call.1} parent=5 // pred_check
        %p936 = pneg %p935
      $region50: #{tpu_custom_call.1} parent=5 // pred_check_branch
        %938 = sbr.rel (%p936) target = $region52
      $region51: #{tpu_custom_call.1} parent=5 // pred_region
        %s939 = ssub.s32 %s16, 2
        // Predicated region
        $region53: #{tpu_custom_call.1} parent=51 // pred_check
          %p940 = pneg %p113
        $region54: #{tpu_custom_call.1} parent=51 // pred_check_branch
          %942 = sbr.rel (%p940) target = $region56
        $region55: #{tpu_custom_call.1} parent=51 // pred_region
          %s943 = sand.u32 %s98, 1
          %s944 = scalar_lea.sflag [#allocation4], %s943
          %s945 = sand.u32 %s98, 1
          %s946 = smul.addr %s945, 16
          %s947 = scalar_lea.vmem [#allocation8], %s946
          %949 = dma.done %s944, 256
        $region56: #{tpu_custom_call.1} parent=51 // pred_fallthru
          _
      $region52: #{tpu_custom_call.1} parent=5 // pred_fallthru
        _
    $region6: #{tpu_custom_call.1} parent=1 // loop_footer
      %s20 = sadd.s32 1, %s16
    $region7: #{tpu_custom_call.1} parent=1 // loop_footer_branch
      %15 = sbr.rel target = $region3
    $region8: #{tpu_custom_call.1} parent=1 // loop_exit
      _
    %950 = vsyncpa [#allocation3], 1
    %s951 = scalar_lea.sflag [#allocation3], 1
    %952 = vsyncpa %s951, 1
    %953 = vsyncpa [#allocation6], 1
    %954 = vsyncpa [#allocation4], 1
    %s955 = scalar_lea.sflag [#allocation4], 1
    %956 = vsyncpa %s955, 1

</llo_original>
